<compile_context>
chip_gen: v6e
topology: v6e:2x2x1
jax: 0.10.0
libtpu: 0.0.40
codegen_flags: <defaults>
</compile_context>

<pallas_src>
import functools

import jax
import jax.numpy as jnp
from jax.experimental import pallas as pl
from jax.experimental.pallas import tpu as pltpu


def _forward_pair_kernel(xsa_ref, xsb_ref, tsa_ref, tsb_ref, w_ref, p_ref,
                         out_ref, *, L, block_b, pad, mxu_dtype):
    f32 = jnp.float32
    N = block_b * L

    # ---- single_fv for all block_b pairs (a and b halves): one matmul ----
    Xa = xsa_ref[0].astype(mxu_dtype)                        # (D, N)
    Xb = xsb_ref[0].astype(mxu_dtype)                        # (D, N)
    X = jnp.concatenate([Xa, Xb], axis=1)                    # (D, 2N)
    W = w_ref[...].astype(mxu_dtype)                         # (D, H)
    proj = jax.lax.dot_general(                              # W^T @ X -> (H, 2N)
        W, X, (((0,), (0,)), ((), ())), preferred_element_type=f32)
    ts_row = jnp.concatenate([tsa_ref[0], tsb_ref[0]], axis=1)   # (1, 2N)
    wt_col = p_ref[:, 0:1]                                   # (H, 1)
    b_col = p_ref[:, 1:2]                                    # (H, 1)
    fvT = jnp.tanh(proj + wt_col * ts_row + b_col)           # (H, 2N), f32
    fvT = fvT.astype(mxu_dtype)

    # ---- score_pair: one batched Gram matmul (contract H, sublane axis) ----
    G = jax.lax.dot_general(                                 # (N, N)
        fvT[:, :N], fvT[:, N:], (((0,), (0,)), ((), ())),
        preferred_element_type=f32)

    # Stack the diagonal (L, L) blocks and align diagonals so that
    #   aligned[b*L + t, k] = g_b[t, t + k - L]   (zero outside valid range)
    diag = jnp.concatenate(
        [G[b * L:(b + 1) * L, b * L:(b + 1) * L] for b in range(block_b)],
        axis=0)                                              # (N, L)
    x = jnp.concatenate([jnp.zeros((N, L), f32), diag], axis=1)   # (N, 2L)

    r_idx = jax.lax.broadcasted_iota(jnp.int32, (N, 2 * L), 0)
    if (L & (L - 1)) == 0:
        t_idx = r_idx & (L - 1)                              # t = row % L
    else:
        t_idx = jax.lax.rem(r_idx, L)
    s = 1
    while s < L:                     # ceil(log2 L) rounds, masks built once
        shifted = jnp.concatenate(
            [x[:, s:], jnp.zeros((N, s), f32)], axis=1)
        x = jnp.where((t_idx & s) != 0, shifted, x)
        s *= 2

    # Per-pair column sums, packed into one lane-dense (multiple-of-128) row.
    # TODO(synk): switch this tiny static loop to lax.fori_loop if block_b*L
    #             is ever scaled far beyond the vreg budget.
    rows = [jnp.sum(x[b * L:(b + 1) * L], axis=0, keepdims=True)
            for b in range(block_b)]                         # each (1, 2L)
    if pad:
        rows.append(jnp.zeros((1, pad), f32))
    out_ref[0] = jnp.concatenate(rows, axis=1)               # (1, row_w_pad)


def forward_pair(ts_a, ts_b, xs_a, xs_b, params, *, block_b=None,
                 mxu_dtype=jnp.float32):
    """Matches Model.forward(ts_a, ts_b, xs_a, xs_b) with offsets=None."""
    B, L = ts_a.shape
    D = xs_a.shape[-1]
    H = params["w"].shape[-1]
    f32 = jnp.float32

    # Tile selection: pack as many pairs per grid step as gives a lane-dense
    # (multiple-of-128) output row, preferring an even grid (v7x has 2 TCs).
    if block_b is None:
        cap = max(1, 512 // (2 * L))                 # packed rows <= ~512 lanes
        divisors = [d for d in range(1, B + 1) if B % d == 0 and d <= cap]
        block_b = divisors[-1]
        lane_ok = [d for d in divisors if (d * 2 * L) % 128 == 0]
        if lane_ok:
            block_b = lane_ok[-1]
            even = [d for d in lane_ok if (B // d) % 2 == 0]
            if even:
                block_b = even[-1]
    assert B % block_b == 0, (B, block_b)
    nb = B // block_b
    N = block_b * L
    row_w = 2 * N
    pad = (-row_w) % 128
    row_w_pad = row_w + pad

    # Lane-dense input layout: time*batch on lanes, feature dim on sublanes.
    def to_lanes(x):                                 # (B, L, D) -> (nb, D, N)
        x = x.astype(f32).reshape(nb, block_b, L, D)
        return jnp.transpose(x, (0, 3, 1, 2)).reshape(nb, D, N)

    xsa_t = to_lanes(xs_a)
    xsb_t = to_lanes(xs_b)
    tsa = ts_a.astype(f32).reshape(nb, 1, N)         # free reshape (contiguous)
    tsb = ts_b.astype(f32).reshape(nb, 1, N)
    w = params["w"].astype(f32)                      # (D, H)
    p2 = jnp.stack([params["wt"].astype(f32),
                    params["b"].astype(f32)], axis=1)        # (H, 2)

    kernel = functools.partial(_forward_pair_kernel, L=L, block_b=block_b,
                               pad=pad, mxu_dtype=mxu_dtype)

    # Rough per-step VMEM estimate (bytes); only raise the limit if needed,
    # keeping under v7x's 64 MiB physical VMEM.
    est = 4 * (2 * (2 * D * N + 2 * N)        # double-buffered xs/ts inputs
               + D * H + 2 * H                # weights
               + 2 * H * 2 * N                # fvT (+ cast copy)
               + N * N                        # Gram
               + 4 * N * 2 * L)               # skew temporaries
    cp = dict(dimension_semantics=("parallel",))
    if est > (24 << 20):
        cp["vmem_limit_bytes"] = min(64 << 20, 2 * est)

    out = pl.pallas_call(
        kernel,
        out_shape=jax.ShapeDtypeStruct((nb, 1, row_w_pad), jnp.float32),
        grid=(nb,),
        in_specs=[
            pl.BlockSpec((1, D, N), lambda i: (i, 0, 0)),
            pl.BlockSpec((1, D, N), lambda i: (i, 0, 0)),
            pl.BlockSpec((1, 1, N), lambda i: (i, 0, 0)),
            pl.BlockSpec((1, 1, N), lambda i: (i, 0, 0)),
            pl.BlockSpec((D, H), lambda i: (0, 0)),
            pl.BlockSpec((H, 2), lambda i: (0, 0)),
        ],
        out_specs=pl.BlockSpec((1, 1, row_w_pad), lambda i: (i, 0, 0)),
        compiler_params=pltpu.CompilerParams(**cp),
    )(xsa_t, xsb_t, tsa, tsb, w, p2)

    return out.reshape(nb, row_w_pad)[:, :row_w].reshape(B, 2 * L)


def _reference(ts_a, ts_b, xs_a, xs_b, params):
    """Pure-JAX reference of the same concrete instantiation."""
    def fv(ts, xs):
        return jnp.tanh(jnp.einsum("bld,dh->blh", xs, params["w"])
                        + ts[..., None] * params["wt"][None, None, :]
                        + params["b"][None, None, :])
    fa = fv(ts_a, xs_a)
    fb = fv(ts_b, xs_b)
    B, L, H = fa.shape
    scores = []
    for o in range(-L, L):
        t = jnp.arange(L)
        valid = (t + o >= 0) & (t + o < L)
        tb = jnp.clip(t + o, 0, L - 1)
        s = jnp.sum(fa * fb[:, tb, :] * valid[None, :, None].astype(fa.dtype),
                    axis=(1, 2))
        scores.append(s)
    return jnp.stack(scores, axis=1)                  # (B, 2L)


if __name__ == "__main__":
    B, L, D, H = 8, 16, 16, 32

    key = jax.random.PRNGKey(0)
    k1, k2, k3, k4, k5, k6, k7 = jax.random.split(key, 7)

    # deterministic synthetic parameters (no checkpoint loading)
    params = {
        "w": jax.random.normal(k1, (D, H), jnp.float32) * 0.1,
        "wt": jax.random.normal(k2, (H,), jnp.float32) * 0.1,
        "b": jax.random.normal(k3, (H,), jnp.float32) * 0.1,
    }

    ts_a = jax.random.normal(k4, (B, L), jnp.float32)
    ts_b = jax.random.normal(k5, (B, L), jnp.float32)
    xs_a = jax.random.normal(k6, (B, L, D), jnp.float32)
    xs_b = jax.random.normal(k7, (B, L, D), jnp.float32)

    ref = _reference(ts_a, ts_b, xs_a, xs_b, params)

    # f32 path: tight tolerance.
    scores = forward_pair(ts_a, ts_b, xs_a, xs_b, params)
    scores = jax.block_until_ready(scores)
    assert scores.shape == (B, 2 * L), scores.shape
    assert jnp.allclose(scores, ref, atol=1e-4, rtol=1e-4), float(
        jnp.max(jnp.abs(scores - ref)))

    # bf16-operand path (v6e/v7x MXU): loose tolerance (f32 accumulate/tanh).
    scores_bf16 = forward_pair(ts_a, ts_b, xs_a, xs_b, params,
                               mxu_dtype=jnp.bfloat16)
    scores_bf16 = jax.block_until_ready(scores_bf16)
    rel = float(jnp.linalg.norm(scores_bf16 - ref) / (jnp.linalg.norm(ref) + 1e-12))
    assert rel < 5e-2, rel

    print("KERNEL_OK")
</pallas_src>

<mosaic_0001>
module attributes {stable_mosaic.version = 11 : i64} {
  func.func @_forward_pair_kernel(%arg0: i32, %arg1: memref<1x16x64xf32, #tpu.memory_space<vmem>>, %arg2: memref<1x16x64xf32, #tpu.memory_space<vmem>>, %arg3: memref<1x1x64xf32, #tpu.memory_space<vmem>>, %arg4: memref<1x1x64xf32, #tpu.memory_space<vmem>>, %arg5: memref<16x32xf32, #tpu.memory_space<vmem>>, %arg6: memref<32x2xf32, #tpu.memory_space<vmem>>, %arg7: memref<1x1x128xf32, #tpu.memory_space<vmem>>) attributes {dimension_semantics = [#tpu.dimension_semantics<parallel>], iteration_bounds = array<i64: 2>, scalar_prefetch = 0 : i64, scratch_operands = 0 : i64, tpu.core_type = #tpu.core_type<tc>, window_params = [{transform_indices = @transform_0, window_bounds = array<i64: 1, 16, 64>}, {transform_indices = @transform_1, window_bounds = array<i64: 1, 16, 64>}, {transform_indices = @transform_2, window_bounds = array<i64: 1, 1, 64>}, {transform_indices = @transform_3, window_bounds = array<i64: 1, 1, 64>}, {pipeline_mode = #tpu.pipeline_mode<synchronous>, transform_indices = @transform_4, window_bounds = array<i64: 16, 32>}, {pipeline_mode = #tpu.pipeline_mode<synchronous>, transform_indices = @transform_5, window_bounds = array<i64: 32, 2>}, {transform_indices = @transform_6, window_bounds = array<i64: 1, 1, 128>}]} {
    %c0 = arith.constant 0 : index
    %c0_0 = arith.constant 0 : index
    %c0_1 = arith.constant 0 : index
    %0 = vector.load %arg1[%c0, %c0_0, %c0_1] : memref<1x16x64xf32, #tpu.memory_space<vmem>>, vector<1x16x64xf32>
    %1 = vector.shape_cast %0 : vector<1x16x64xf32> to vector<16x64xf32>
    %c0_2 = arith.constant 0 : index
    %c0_3 = arith.constant 0 : index
    %c0_4 = arith.constant 0 : index
    %2 = vector.load %arg2[%c0_2, %c0_3, %c0_4] : memref<1x16x64xf32, #tpu.memory_space<vmem>>, vector<1x16x64xf32>
    %3 = vector.shape_cast %2 : vector<1x16x64xf32> to vector<16x64xf32>
    %4 = tpu.concatenate %1, %3 in 1 : vector<16x64xf32>, vector<16x64xf32> -> vector<16x128xf32>
    %c0_5 = arith.constant 0 : index
    %c0_6 = arith.constant 0 : index
    %5 = vector.load %arg5[%c0_5, %c0_6] : memref<16x32xf32, #tpu.memory_space<vmem>>, vector<16x32xf32>
    %cst = arith.constant dense<0.000000e+00> : vector<32x128xf32>
    %6 = tpu.matmul %5, %4, %cst {dimension_numbers = #tpu.dot_dimension_numbers<[0], [0], [1], [1], [0, 1, 1, 1], [], []>} : vector<16x32xf32>, vector<16x128xf32>, vector<32x128xf32> -> vector<32x128xf32>
    %c0_7 = arith.constant 0 : index
    %c0_8 = arith.constant 0 : index
    %c0_9 = arith.constant 0 : index
    %7 = vector.load %arg3[%c0_7, %c0_8, %c0_9] : memref<1x1x64xf32, #tpu.memory_space<vmem>>, vector<1x1x64xf32>
    %8 = vector.shape_cast %7 : vector<1x1x64xf32> to vector<1x64xf32>
    %c0_10 = arith.constant 0 : index
    %c0_11 = arith.constant 0 : index
    %c0_12 = arith.constant 0 : index
    %9 = vector.load %arg4[%c0_10, %c0_11, %c0_12] : memref<1x1x64xf32, #tpu.memory_space<vmem>>, vector<1x1x64xf32>
    %10 = vector.shape_cast %9 : vector<1x1x64xf32> to vector<1x64xf32>
    %11 = tpu.concatenate %8, %10 in 1 : vector<1x64xf32>, vector<1x64xf32> -> vector<1x128xf32>
    %c0_13 = arith.constant 0 : index
    %c0_14 = arith.constant 0 : index
    %12 = vector.load %arg6[%c0_13, %c0_14] : memref<32x2xf32, #tpu.memory_space<vmem>>, vector<32x1xf32>
    %c0_15 = arith.constant 0 : index
    %c1 = arith.constant 1 : index
    %13 = vector.load %arg6[%c0_15, %c1] : memref<32x2xf32, #tpu.memory_space<vmem>>, vector<32x1xf32>
    %14 = vector.broadcast %12 : vector<32x1xf32> to vector<32x128xf32>
    %15 = vector.broadcast %11 : vector<1x128xf32> to vector<32x128xf32>
    %16 = arith.mulf %14, %15 : vector<32x128xf32>
    %17 = arith.addf %6, %16 : vector<32x128xf32>
    %18 = vector.broadcast %13 : vector<32x1xf32> to vector<32x128xf32>
    %19 = arith.addf %17, %18 : vector<32x128xf32>
    %20 = math.tanh %19 : vector<32x128xf32>
    %21 = vector.extract_strided_slice %20 {offsets = [0, 0], sizes = [32, 64], strides = [1, 1]} : vector<32x128xf32> to vector<32x64xf32>
    %22 = vector.extract_strided_slice %20 {offsets = [0, 64], sizes = [32, 64], strides = [1, 1]} : vector<32x128xf32> to vector<32x64xf32>
    %cst_16 = arith.constant dense<0.000000e+00> : vector<64x64xf32>
    %23 = tpu.matmul %21, %22, %cst_16 {dimension_numbers = #tpu.dot_dimension_numbers<[0], [0], [1], [1], [0, 1, 1, 1], [], []>} : vector<32x64xf32>, vector<32x64xf32>, vector<64x64xf32> -> vector<64x64xf32>
    %24 = vector.extract_strided_slice %23 {offsets = [0, 0], sizes = [16, 16], strides = [1, 1]} : vector<64x64xf32> to vector<16x16xf32>
    %25 = vector.extract_strided_slice %23 {offsets = [16, 16], sizes = [16, 16], strides = [1, 1]} : vector<64x64xf32> to vector<16x16xf32>
    %26 = vector.extract_strided_slice %23 {offsets = [32, 32], sizes = [16, 16], strides = [1, 1]} : vector<64x64xf32> to vector<16x16xf32>
    %27 = vector.extract_strided_slice %23 {offsets = [48, 48], sizes = [16, 16], strides = [1, 1]} : vector<64x64xf32> to vector<16x16xf32>
    %28 = tpu.concatenate %24, %25, %26, %27 in 0 : vector<16x16xf32>, vector<16x16xf32>, vector<16x16xf32>, vector<16x16xf32> -> vector<64x16xf32>
    %cst_17 = arith.constant 0.000000e+00 : f32
    %29 = vector.broadcast %cst_17 : f32 to vector<64x16xf32>
    %30 = tpu.concatenate %29, %28 in 1 : vector<64x16xf32>, vector<64x16xf32> -> vector<64x32xf32>
    %31 = tpu.iota {dimensions = array<i32: 0>} : vector<64x32xi32>
    %c15_i32 = arith.constant 15 : i32
    %32 = vector.broadcast %c15_i32 : i32 to vector<64x32xi32>
    %33 = arith.andi %31, %32 : vector<64x32xi32>
    %34 = vector.extract_strided_slice %30 {offsets = [0, 1], sizes = [64, 31], strides = [1, 1]} : vector<64x32xf32> to vector<64x31xf32>
    %cst_18 = arith.constant 0.000000e+00 : f32
    %35 = vector.broadcast %cst_18 : f32 to vector<64x1xf32>
    %36 = tpu.concatenate %34, %35 in 1 : vector<64x31xf32>, vector<64x1xf32> -> vector<64x32xf32>
    %c1_i32 = arith.constant 1 : i32
    %37 = vector.broadcast %c1_i32 : i32 to vector<64x32xi32>
    %38 = arith.andi %33, %37 : vector<64x32xi32>
    %c0_i32 = arith.constant 0 : i32
    %39 = vector.broadcast %c0_i32 : i32 to vector<64x32xi32>
    %40 = arith.cmpi ne, %38, %39 : vector<64x32xi32>
    %41 = arith.select %40, %36, %30 : vector<64x32xi1>, vector<64x32xf32>
    %42 = vector.extract_strided_slice %41 {offsets = [0, 2], sizes = [64, 30], strides = [1, 1]} : vector<64x32xf32> to vector<64x30xf32>
    %cst_19 = arith.constant 0.000000e+00 : f32
    %43 = vector.broadcast %cst_19 : f32 to vector<64x2xf32>
    %44 = tpu.concatenate %42, %43 in 1 : vector<64x30xf32>, vector<64x2xf32> -> vector<64x32xf32>
    %c2_i32 = arith.constant 2 : i32
    %45 = vector.broadcast %c2_i32 : i32 to vector<64x32xi32>
    %46 = arith.andi %33, %45 : vector<64x32xi32>
    %c0_i32_20 = arith.constant 0 : i32
    %47 = vector.broadcast %c0_i32_20 : i32 to vector<64x32xi32>
    %48 = arith.cmpi ne, %46, %47 : vector<64x32xi32>
    %49 = arith.select %48, %44, %41 : vector<64x32xi1>, vector<64x32xf32>
    %50 = vector.extract_strided_slice %49 {offsets = [0, 4], sizes = [64, 28], strides = [1, 1]} : vector<64x32xf32> to vector<64x28xf32>
    %cst_21 = arith.constant 0.000000e+00 : f32
    %51 = vector.broadcast %cst_21 : f32 to vector<64x4xf32>
    %52 = tpu.concatenate %50, %51 in 1 : vector<64x28xf32>, vector<64x4xf32> -> vector<64x32xf32>
    %c4_i32 = arith.constant 4 : i32
    %53 = vector.broadcast %c4_i32 : i32 to vector<64x32xi32>
    %54 = arith.andi %33, %53 : vector<64x32xi32>
    %c0_i32_22 = arith.constant 0 : i32
    %55 = vector.broadcast %c0_i32_22 : i32 to vector<64x32xi32>
    %56 = arith.cmpi ne, %54, %55 : vector<64x32xi32>
    %57 = arith.select %56, %52, %49 : vector<64x32xi1>, vector<64x32xf32>
    %58 = vector.extract_strided_slice %57 {offsets = [0, 8], sizes = [64, 24], strides = [1, 1]} : vector<64x32xf32> to vector<64x24xf32>
    %cst_23 = arith.constant 0.000000e+00 : f32
    %59 = vector.broadcast %cst_23 : f32 to vector<64x8xf32>
    %60 = tpu.concatenate %58, %59 in 1 : vector<64x24xf32>, vector<64x8xf32> -> vector<64x32xf32>
    %c8_i32 = arith.constant 8 : i32
    %61 = vector.broadcast %c8_i32 : i32 to vector<64x32xi32>
    %62 = arith.andi %33, %61 : vector<64x32xi32>
    %c0_i32_24 = arith.constant 0 : i32
    %63 = vector.broadcast %c0_i32_24 : i32 to vector<64x32xi32>
    %64 = arith.cmpi ne, %62, %63 : vector<64x32xi32>
    %65 = arith.select %64, %60, %57 : vector<64x32xi1>, vector<64x32xf32>
    %66 = vector.extract_strided_slice %65 {offsets = [0, 0], sizes = [16, 32], strides = [1, 1]} : vector<64x32xf32> to vector<16x32xf32>
    %cst_25 = arith.constant dense<0.000000e+00> : vector<32xf32>
    %67 = vector.multi_reduction <add>, %66, %cst_25 [0] : vector<16x32xf32> to vector<32xf32>
    %68 = vector.shape_cast %67 : vector<32xf32> to vector<1x32xf32>
    %69 = vector.extract_strided_slice %65 {offsets = [16, 0], sizes = [16, 32], strides = [1, 1]} : vector<64x32xf32> to vector<16x32xf32>
    %cst_26 = arith.constant dense<0.000000e+00> : vector<32xf32>
    %70 = vector.multi_reduction <add>, %69, %cst_26 [0] : vector<16x32xf32> to vector<32xf32>
    %71 = vector.shape_cast %70 : vector<32xf32> to vector<1x32xf32>
    %72 = vector.extract_strided_slice %65 {offsets = [32, 0], sizes = [16, 32], strides = [1, 1]} : vector<64x32xf32> to vector<16x32xf32>
    %cst_27 = arith.constant dense<0.000000e+00> : vector<32xf32>
    %73 = vector.multi_reduction <add>, %72, %cst_27 [0] : vector<16x32xf32> to vector<32xf32>
    %74 = vector.shape_cast %73 : vector<32xf32> to vector<1x32xf32>
    %75 = vector.extract_strided_slice %65 {offsets = [48, 0], sizes = [16, 32], strides = [1, 1]} : vector<64x32xf32> to vector<16x32xf32>
    %cst_28 = arith.constant dense<0.000000e+00> : vector<32xf32>
    %76 = vector.multi_reduction <add>, %75, %cst_28 [0] : vector<16x32xf32> to vector<32xf32>
    %77 = vector.shape_cast %76 : vector<32xf32> to vector<1x32xf32>
    %78 = tpu.concatenate %68, %71, %74, %77 in 1 : vector<1x32xf32>, vector<1x32xf32>, vector<1x32xf32>, vector<1x32xf32> -> vector<1x128xf32>
    %c0_29 = arith.constant 0 : index
    %c0_30 = arith.constant 0 : index
    %c0_31 = arith.constant 0 : index
    %79 = vector.load %arg7[%c0_29, %c0_30, %c0_31] : memref<1x1x128xf32, #tpu.memory_space<vmem>>, vector<1x1x128xf32>
    %80 = vector.shape_cast %79 : vector<1x1x128xf32> to vector<1x128xf32>
    %81 = vector.shape_cast %78 : vector<1x128xf32> to vector<1x1x128xf32>
    tpu.vector_store %arg7[%c0_29, %c0_30, %c0_31], %81 {strides = array<i32>} : memref<1x1x128xf32, #tpu.memory_space<vmem>>, vector<1x1x128xf32>,
    return
  }
  func.func @transform_0(%arg0: i32) -> (i32, i32, i32) {
    %c0_i32 = arith.constant 0 : i32
    %c0_i32_0 = arith.constant 0 : i32
    %c0_i32_1 = arith.constant 0 : i32
    return %arg0, %c0_i32, %c0_i32_0 : i32, i32, i32
  }
  func.func @transform_1(%arg0: i32) -> (i32, i32, i32) {
    %c0_i32 = arith.constant 0 : i32
    %c0_i32_0 = arith.constant 0 : i32
    %c0_i32_1 = arith.constant 0 : i32
    return %arg0, %c0_i32, %c0_i32_0 : i32, i32, i32
  }
  func.func @transform_2(%arg0: i32) -> (i32, i32, i32) {
    %c0_i32 = arith.constant 0 : i32
    %c0_i32_0 = arith.constant 0 : i32
    %c0_i32_1 = arith.constant 0 : i32
    return %arg0, %c0_i32, %c0_i32_0 : i32, i32, i32
  }
  func.func @transform_3(%arg0: i32) -> (i32, i32, i32) {
    %c0_i32 = arith.constant 0 : i32
    %c0_i32_0 = arith.constant 0 : i32
    %c0_i32_1 = arith.constant 0 : i32
    return %arg0, %c0_i32, %c0_i32_0 : i32, i32, i32
  }
  func.func @transform_4(%arg0: i32) -> (i32, i32) {
    %c0_i32 = arith.constant 0 : i32
    %c0_i32_0 = arith.constant 0 : i32
    %c0_i32_1 = arith.constant 0 : i32
    return %c0_i32, %c0_i32_0 : i32, i32
  }
  func.func @transform_5(%arg0: i32) -> (i32, i32) {
    %c0_i32 = arith.constant 0 : i32
    %c0_i32_0 = arith.constant 0 : i32
    %c0_i32_1 = arith.constant 0 : i32
    return %c0_i32, %c0_i32_0 : i32, i32
  }
  func.func @transform_6(%arg0: i32) -> (i32, i32, i32) {
    %c0_i32 = arith.constant 0 : i32
    %c0_i32_0 = arith.constant 0 : i32
    %c0_i32_1 = arith.constant 0 : i32
    return %arg0, %c0_i32, %c0_i32_0 : i32, i32, i32
  }
}

</mosaic_0001>

<llo_original>
// kernel: tpu_custom_call.1
$region0: #{tpu_custom_call.1}
  #allocation0 [shape = 'u32[]', space=smem, size = 0x4, offset = 0x4, fixed_abs, tag = 'smem constant byte address 0x4 - core index']
  #allocation1 [shape = 'u32[144,128]{1,0:T(1,128)}', space=vmem, size = 0x12000, scoped, tag = 'internal scratch']
  %s0 = inlined_call_operand.vmem [shape: f32[2,16,64], index: 0, kind: input, shape index: {}]
  %s1 = inlined_call_operand.hbm [shape: f32[2,16,64], index: 1, kind: input, shape index: {}]
  %s2 = inlined_call_operand.vmem [shape: f32[2,1,64], index: 2, kind: input, shape index: {}]
  %s3 = inlined_call_operand.vmem [shape: f32[2,1,64], index: 3, kind: input, shape index: {}]
  %s4 = inlined_call_operand.hbm [shape: f32[16,32], index: 4, kind: input, shape index: {}]
  %s5 = inlined_call_operand.vmem [shape: f32[32,2], index: 5, kind: input, shape index: {}]
  %s6 = inlined_call_operand.hbm [shape: f32[2,1,128], index: 6, kind: output, shape index: {}]
  %s7 = sld [smem:[#allocation0]]
  $region65: #{tpu_custom_call.1} parent=0
    _
  %s9 = ssub.s32 1, %s7
  %s10 = scalar_select 0, %s9, %s7
  $region1: #{tpu_custom_call.1} parent=0
    #allocation2 [shape = 'u8[16384]{0}', space=vmem, size = 0x4000, scoped, tag = 'input window, operand 1']
    #allocation3 [shape = 's32[2]{0}', space=sflag, size = 0x8, scoped, tag = 'scoped memory for tpu_custom_call.1']
    #allocation4 [shape = 's32[2]{0}', space=sflag, size = 0x8, scoped, tag = 'scoped memory for tpu_custom_call.1']
    #allocation5 [shape = 'u8[8192]{0}', space=vmem, size = 0x2000, scoped, tag = 'input window, operand 4, single buffered']
    #allocation6 [shape = 's32[1]{0}', space=sflag, size = 0x4, scoped, tag = 'scoped memory for tpu_custom_call.1']
    #allocation7 [shape = 'u8[1024]{0}', space=vmem, size = 0x400, scoped, tag = 'output window, operand 0']
    %11 = vsyncpa [#allocation3], 0
    %s12 = scalar_lea.sflag [#allocation3], 1
    %13 = vsyncpa %s12, 0
    %14 = vsyncpa [#allocation6], 0
    %15 = vsyncpa [#allocation4], 0
    %s16 = scalar_lea.sflag [#allocation4], 1
    %17 = vsyncpa %s16, 0
    loop: start=0, step=1, limit=4
    $region2: #{tpu_custom_call.1} parent=1 // loop_pre_header
      _
    $region3: #{tpu_custom_call.1} parent=1 // loop_header
      %s19 = sphi 0, %s23
      %p20 = scmp.ge.s32.totalorder %s19, 4
      %s29 = sphi 0, %s31
      %s32 = sphi 0, %s29
      %s33 = sphi 0, %s32
      %s49 = sphi 0, %s33
      %s55 = sphi 0, %s57
      %s58 = sphi 0, %s55
      %s59 = sphi 0, %s58
      %s75 = sphi 0, %s59
      %s81 = sphi 0, %s83
      %s84 = sphi 0, %s81
      %s85 = sphi 0, %s84
      %s101 = sphi 0, %s85
      %s107 = sphi 0, %s109
      %s110 = sphi 0, %s107
      %s111 = sphi 0, %s110
      %s127 = sphi 0, %s111
      %s131 = sphi 0, %s131
      %s133 = sphi 0, %s131
      %s134 = sphi 0, %s133
      %s148 = sphi 0, %s134
      %s152 = sphi 0, %s152
      %s154 = sphi 0, %s152
      %s155 = sphi 0, %s154
      %s169 = sphi 0, %s155
      %s175 = sphi 0, %s177
      %s178 = sphi 0, %s175
      %s179 = sphi 0, %s178
      %s195 = sphi 0, %s179
    $region4: #{tpu_custom_call.1} parent=1 // loop_header_branch
      %22 = sbr.rel (%p20) target = $region8
    $region5: #{tpu_custom_call.1} parent=1 // loop_body
      %s24 = ssub.s32 %s19, 1
      %s25 = ssub.s32 %s19, 2
      %s26 = sadd.s32 %s19, 1
      %s27 = ssub.s32 %s19, %s26
      %p28 = scmp.eq.s32.totalorder %s27, 0
      %s30 = sadd.s32 %s29, 1
      %s31 = scalar_select %p28, %s29, %s30
      %p34 = pneg %p28
      %p35 = scmp.eq.s32.totalorder %s19, 1
      %p36 = por %p34, %p35
      %p37 = scmp.ne.s32.totalorder %s29, %s32
      %p38 = scmp.eq.s32.totalorder %s19, 0
      %p39 = por %p37, %p38
      %p40 = scmp.ne.s32.totalorder %s29, %s32
      %p41 = scmp.eq.s32.totalorder %s24, 1
      %p42 = por %p40, %p41
      %p43 = scmp.ne.s32.totalorder %s32, %s33
      %p44 = scmp.eq.s32.totalorder %s24, 0
      %p45 = por %p43, %p44
      %p46 = scmp.ne.s32.totalorder %s32, %s33
      %p47 = scmp.eq.s32.totalorder %s25, 1
      %p48 = por %p46, %p47
      %p50 = scmp.ne.s32.totalorder %s33, %s49
      %p51 = scmp.eq.s32.totalorder %s25, 0
      %p52 = por %p50, %p51
      %s53 = ssub.s32 %s19, %s26
      %p54 = scmp.eq.s32.totalorder %s53, 0
      %s56 = sadd.s32 %s55, 1
      %s57 = scalar_select %p54, %s55, %s56
      %p60 = pneg %p54
      %p61 = scmp.eq.s32.totalorder %s19, 1
      %p62 = por %p60, %p61
      %p63 = scmp.ne.s32.totalorder %s55, %s58
      %p64 = scmp.eq.s32.totalorder %s19, 0
      %p65 = por %p63, %p64
      %p66 = scmp.ne.s32.totalorder %s55, %s58
      %p67 = scmp.eq.s32.totalorder %s24, 1
      %p68 = por %p66, %p67
      %p69 = scmp.ne.s32.totalorder %s58, %s59
      %p70 = scmp.eq.s32.totalorder %s24, 0
      %p71 = por %p69, %p70
      %p72 = scmp.ne.s32.totalorder %s58, %s59
      %p73 = scmp.eq.s32.totalorder %s25, 1
      %p74 = por %p72, %p73
      %p76 = scmp.ne.s32.totalorder %s59, %s75
      %p77 = scmp.eq.s32.totalorder %s25, 0
      %p78 = por %p76, %p77
      %s79 = ssub.s32 %s19, %s26
      %p80 = scmp.eq.s32.totalorder %s79, 0
      %s82 = sadd.s32 %s81, 1
      %s83 = scalar_select %p80, %s81, %s82
      %p86 = pneg %p80
      %p87 = scmp.eq.s32.totalorder %s19, 1
      %p88 = por %p86, %p87
      %p89 = scmp.ne.s32.totalorder %s81, %s84
      %p90 = scmp.eq.s32.totalorder %s19, 0
      %p91 = por %p89, %p90
      %p92 = scmp.ne.s32.totalorder %s81, %s84
      %p93 = scmp.eq.s32.totalorder %s24, 1
      %p94 = por %p92, %p93
      %p95 = scmp.ne.s32.totalorder %s84, %s85
      %p96 = scmp.eq.s32.totalorder %s24, 0
      %p97 = por %p95, %p96
      %p98 = scmp.ne.s32.totalorder %s84, %s85
      %p99 = scmp.eq.s32.totalorder %s25, 1
      %p100 = por %p98, %p99
      %p102 = scmp.ne.s32.totalorder %s85, %s101
      %p103 = scmp.eq.s32.totalorder %s25, 0
      %p104 = por %p102, %p103
      %s105 = ssub.s32 %s19, %s26
      %p106 = scmp.eq.s32.totalorder %s105, 0
      %s108 = sadd.s32 %s107, 1
      %s109 = scalar_select %p106, %s107, %s108
      %p112 = pneg %p106
      %p113 = scmp.eq.s32.totalorder %s19, 1
      %p114 = por %p112, %p113
      %p115 = scmp.ne.s32.totalorder %s107, %s110
      %p116 = scmp.eq.s32.totalorder %s19, 0
      %p117 = por %p115, %p116
      %p118 = scmp.ne.s32.totalorder %s107, %s110
      %p119 = scmp.eq.s32.totalorder %s24, 1
      %p120 = por %p118, %p119
      %p121 = scmp.ne.s32.totalorder %s110, %s111
      %p122 = scmp.eq.s32.totalorder %s24, 0
      %p123 = por %p121, %p122
      %p124 = scmp.ne.s32.totalorder %s110, %s111
      %p125 = scmp.eq.s32.totalorder %s25, 1
      %p126 = por %p124, %p125
      %p128 = scmp.ne.s32.totalorder %s111, %s127
      %p129 = scmp.eq.s32.totalorder %s25, 0
      %p130 = por %p128, %p129
      %s132 = sadd.s32 %s131, 1
      %p135 = scmp.eq.s32.totalorder %s19, 1
      %p136 = scmp.ne.s32.totalorder %s131, %s133
      %p137 = scmp.eq.s32.totalorder %s19, 0
      %p138 = por %p136, %p137
      %p139 = scmp.ne.s32.totalorder %s131, %s133
      %p140 = scmp.eq.s32.totalorder %s24, 1
      %p141 = por %p139, %p140
      %p142 = scmp.ne.s32.totalorder %s133, %s134
      %p143 = scmp.eq.s32.totalorder %s24, 0
      %p144 = por %p142, %p143
      %p145 = scmp.ne.s32.totalorder %s133, %s134
      %p146 = scmp.eq.s32.totalorder %s25, 1
      %p147 = por %p145, %p146
      %p149 = scmp.ne.s32.totalorder %s134, %s148
      %p150 = scmp.eq.s32.totalorder %s25, 0
      %p151 = por %p149, %p150
      %s153 = sadd.s32 %s152, 1
      %p156 = scmp.eq.s32.totalorder %s19, 1
      %p157 = scmp.ne.s32.totalorder %s152, %s154
      %p158 = scmp.eq.s32.totalorder %s19, 0
      %p159 = por %p157, %p158
      %p160 = scmp.ne.s32.totalorder %s152, %s154
      %p161 = scmp.eq.s32.totalorder %s24, 1
      %p162 = por %p160, %p161
      %p163 = scmp.ne.s32.totalorder %s154, %s155
      %p164 = scmp.eq.s32.totalorder %s24, 0
      %p165 = por %p163, %p164
      %p166 = scmp.ne.s32.totalorder %s154, %s155
      %p167 = scmp.eq.s32.totalorder %s25, 1
      %p168 = por %p166, %p167
      %p170 = scmp.ne.s32.totalorder %s155, %s169
      %p171 = scmp.eq.s32.totalorder %s25, 0
      %p172 = por %p170, %p171
      %s173 = ssub.s32 %s19, %s26
      %p174 = scmp.eq.s32.totalorder %s173, 0
      %s176 = sadd.s32 %s175, 1
      %s177 = scalar_select %p174, %s175, %s176
      %p180 = pneg %p174
      %p181 = scmp.eq.s32.totalorder %s19, 1
      %p182 = por %p180, %p181
      %p183 = scmp.ne.s32.totalorder %s175, %s178
      %p184 = scmp.eq.s32.totalorder %s19, 0
      %p185 = por %p183, %p184
      %p186 = scmp.ne.s32.totalorder %s175, %s178
      %p187 = scmp.eq.s32.totalorder %s24, 1
      %p188 = por %p186, %p187
      %p189 = scmp.ne.s32.totalorder %s178, %s179
      %p190 = scmp.eq.s32.totalorder %s24, 0
      %p191 = por %p189, %p190
      %p192 = scmp.ne.s32.totalorder %s178, %s179
      %p193 = scmp.eq.s32.totalorder %s25, 1
      %p194 = por %p192, %p193
      %p196 = scmp.ne.s32.totalorder %s179, %s195
      %p197 = scmp.eq.s32.totalorder %s25, 0
      %p198 = por %p196, %p197
      %p199 = scmp.le.s32.totalorder 1, %s19
      %p200 = scmp.lt.s32.totalorder %s19, 3
      %p201 = pnand %p199, %p200
      %p202 = pneg %p201
      // Predicated region
      $region9: #{tpu_custom_call.1} parent=5 // pred_check
        _
      $region10: #{tpu_custom_call.1} parent=5 // pred_check_branch
        %204 = sbr.rel (%p201) target = $region12
      $region11: #{tpu_custom_call.1} parent=5 // pred_region
        %s205 = ssub.s32 %s19, 1
        // Predicated region
        $region13: #{tpu_custom_call.1} parent=11 // pred_check
          %p206 = pneg %p144
        $region14: #{tpu_custom_call.1} parent=11 // pred_check_branch
          %208 = sbr.rel (%p206) target = $region16
        $region15: #{tpu_custom_call.1} parent=11 // pred_region
          %s210 = ssub.s32 256, 256
          %211 = vsyncadd [#allocation6], %s210
          %s212 = sshll.u32 [#allocation5], 4
          %s213 = int_to_ptr.vmem [resolvable:$true] %s212
          %218 = dma.hbm_to_vmem [thread:$0]  %s4, 256, %s213, [#allocation6], 128, 128, 8
        $region16: #{tpu_custom_call.1} parent=11 // pred_fallthru
          _
        // Predicated region
        $region17: #{tpu_custom_call.1} parent=11 // pred_check
          %p219 = pneg %p165
        $region18: #{tpu_custom_call.1} parent=11 // pred_check_branch
          %221 = sbr.rel (%p219) target = $region20
        $region19: #{tpu_custom_call.1} parent=11 // pred_region
          _
        $region20: #{tpu_custom_call.1} parent=11 // pred_fallthru
          _
      $region12: #{tpu_custom_call.1} parent=5 // pred_fallthru
        _
      %p222 = scmp.lt.s32.totalorder %s19, 2
      // Predicated region
      $region21: #{tpu_custom_call.1} parent=5 // pred_check
        %p223 = pneg %p222
      $region22: #{tpu_custom_call.1} parent=5 // pred_check_branch
        %225 = sbr.rel (%p223) target = $region24
      $region23: #{tpu_custom_call.1} parent=5 // pred_region
        // Predicated region
        $region25: #{tpu_custom_call.1} parent=23 // pred_check
          %p226 = pneg %p39
        $region26: #{tpu_custom_call.1} parent=23 // pred_check_branch
          %228 = sbr.rel (%p226) target = $region28
        $region27: #{tpu_custom_call.1} parent=23 // pred_region
          %p229 = scmp.lt.s32.totalorder %s19, 1
          %s230 = scalar_select %p229, %s19, 1
          %s231 = smul.addr %s230, 2
          %s232 = smul.addr %s231, 8
          %s233 = scalar_lea.vmem %s0, %s232
        $region28: #{tpu_custom_call.1} parent=23 // pred_fallthru
          _
        // Predicated region
        $region29: #{tpu_custom_call.1} parent=23 // pred_check
          %p234 = pneg %p65
        $region30: #{tpu_custom_call.1} parent=23 // pred_check_branch
          %236 = sbr.rel (%p234) target = $region32
        $region31: #{tpu_custom_call.1} parent=23 // pred_region
          %s237 = sand.u32 %s55, 1
          %s238 = scalar_lea.sflag [#allocation3], %s237
          %s239 = sand.u32 %s55, 1
          %s240 = smul.addr %s239, 16
          %s241 = scalar_lea.vmem [#allocation2], %s240
          %s243 = ssub.s32 256, 256
          %244 = vsyncadd %s238, %s243
          %s245 = smul.addr %s19, 2
          %s246 = smul.addr %s245, 128
          %s247 = scalar_lea.hbm %s1, %s246
          %s248 = sshll.u32 %s241, 4
          %s249 = int_to_ptr.vmem [resolvable:$true] %s248
          %254 = dma.hbm_to_vmem [thread:$0]  %s247, 256, %s249, %s238, 128, 128, 8
        $region32: #{tpu_custom_call.1} parent=23 // pred_fallthru
          _
        // Predicated region
        $region33: #{tpu_custom_call.1} parent=23 // pred_check
          %p255 = pneg %p91
        $region34: #{tpu_custom_call.1} parent=23 // pred_check_branch
          %257 = sbr.rel (%p255) target = $region36
        $region35: #{tpu_custom_call.1} parent=23 // pred_region
          %p258 = scmp.lt.s32.totalorder %s19, 1
          %s259 = scalar_select %p258, %s19, 1
          %s260 = scalar_lea.vmem %s2, %s259
        $region36: #{tpu_custom_call.1} parent=23 // pred_fallthru
          _
        // Predicated region
        $region37: #{tpu_custom_call.1} parent=23 // pred_check
          %p261 = pneg %p117
        $region38: #{tpu_custom_call.1} parent=23 // pred_check_branch
          %263 = sbr.rel (%p261) target = $region40
        $region39: #{tpu_custom_call.1} parent=23 // pred_region
          %p264 = scmp.lt.s32.totalorder %s19, 1
          %s265 = scalar_select %p264, %s19, 1
          %s266 = scalar_lea.vmem %s3, %s265
        $region40: #{tpu_custom_call.1} parent=23 // pred_fallthru
          _
      $region24: #{tpu_custom_call.1} parent=5 // pred_fallthru
        _
      %p267 = scmp.le.s32.totalorder 1, %s19
      %p268 = scmp.lt.s32.totalorder %s19, 3
      %p269 = pnand %p267, %p268
      %p270 = pneg %p269
      // Predicated region
      $region41: #{tpu_custom_call.1} parent=5 // pred_check
        _
      $region42: #{tpu_custom_call.1} parent=5 // pred_check_branch
        %272 = sbr.rel (%p269) target = $region44
      $region43: #{tpu_custom_call.1} parent=5 // pred_region
        %s273 = ssub.s32 %s19, 1
        %s274 = sand.u32 %s58, 1
        %s275 = scalar_lea.sflag [#allocation3], %s274
        %s276 = sand.u32 %s58, 1
        %s277 = smul.addr %s276, 16
        %s278 = scalar_lea.vmem [#allocation2], %s277
        // Predicated region
        $region45: #{tpu_custom_call.1} parent=43 // pred_check
          %p279 = pneg %p71
        $region46: #{tpu_custom_call.1} parent=43 // pred_check_branch
          %281 = sbr.rel (%p279) target = $region48
        $region47: #{tpu_custom_call.1} parent=43 // pred_region
          %282 = dma.done %s275, 256
        $region48: #{tpu_custom_call.1} parent=43 // pred_fallthru
          _
        // Predicated region
        $region49: #{tpu_custom_call.1} parent=43 // pred_check
          %p283 = pneg %p144
        $region50: #{tpu_custom_call.1} parent=43 // pred_check_branch
          %285 = sbr.rel (%p283) target = $region52
        $region51: #{tpu_custom_call.1} parent=43 // pred_region
          %286 = dma.done [#allocation6], 256
        $region52: #{tpu_custom_call.1} parent=43 // pred_fallthru
          _
        %p287 = scmp.lt.s32.totalorder %s24, 1
        %s288 = scalar_select %p287, %s24, 1
        %s289 = smul.addr %s288, 2
        %s290 = smul.addr %s289, 8
        %s291 = scalar_lea.vmem %s0, %s290
        %p292 = pneg %p45
        %p293 = pneg %p42
        %s294 = sand.u32 %s58, 1
        %s295 = scalar_lea.sflag [#allocation3], %s294
        %s296 = sand.u32 %s58, 1
        %s297 = smul.addr %s296, 16
        %s298 = scalar_lea.vmem [#allocation2], %s297
        %p299 = pneg %p71
        %p300 = pneg %p68
        %p301 = scmp.lt.s32.totalorder %s24, 1
        %s302 = scalar_select %p301, %s24, 1
        %s303 = scalar_lea.vmem %s2, %s302
        %p304 = pneg %p97
        %p305 = pneg %p94
        %p306 = scmp.lt.s32.totalorder %s24, 1
        %s307 = scalar_select %p306, %s24, 1
        %s308 = scalar_lea.vmem %s3, %s307
        %p309 = pneg %p123
        %p310 = pneg %p120
        %p311 = pneg %p144
        %p312 = pneg %p141
        %p313 = pneg %p165
        %p314 = pneg %p162
        %p315 = pneg %p191
        %p316 = pneg %p188
        %s317 = sand.u32 %s178, 1
        %s318 = scalar_lea.sflag [#allocation4], %s317
        %s319 = sand.u32 %s178, 1
        %s320 = scalar_lea.vmem [#allocation7], %s319
        %p321 = scmp.lt.s32.totalorder %s24, 1
        %s322 = scalar_select %p321, %s24, 1
        %s323 = smul.addr %s322, 2
        %s324 = smul.addr %s323, 8
        %s325 = scalar_lea.vmem %s0, %s324
        %p326 = scmp.lt.s32.totalorder %s24, 1
        %s327 = scalar_select %p326, %s24, 1
        %s328 = scalar_lea.vmem %s2, %s327
        %p329 = scmp.lt.s32.totalorder %s24, 1
        %s330 = scalar_select %p329, %s24, 1
        %s331 = scalar_lea.vmem %s3, %s330
        %v332 = vld [vmem:[%s325] sm:$0xff]
        %v333 = vld [vmem:[%s325 + $0x8] sm:$0xff]
        %v334 = vld [vmem:[%s278] sm:$0xff]
        %v335 = vld [vmem:[%s278 + $0x8] sm:$0xff]
        %338 = vrot.lane.b32.xlu0 %v334, 64
        %v339 = vpop.permute.xlu0 %338
        %340 = vrot.lane.b32.xlu0 %v335, 64
        %v341 = vpop.permute.xlu0 %340
        %vm344 = vcmask 523264
        %v345 = vsel %vm344, %v332, %v339
        %v346 = vsel %vm344, %v333, %v341
        %v347 = vld [vmem:[#allocation5] sm:$0xff]
        %v348 = vld [vmem:[#allocation5 + $0x8] sm:$0xff]
        %v349 = vld [vmem:[%s328] sm:$0x1]
        %v350 = vld [vmem:[%s331] sm:$0x1]
        %v352 = vlaneseq
        %v353 = vshrl.u32 %v352, 7
        %v354 = vsub.s32 0, %v353
        %v355 = vrot.slane %v350, %v354
        %356 = vrot.lane.b32.xlu0 %v355, 64
        %v357 = vpop.permute.xlu0 %356
        %v359 = vsel %vm344, %v349, %v357
        %v360 = vld [vmem:[%s5] sm:$0xff]
        %v361 = vld [vmem:[%s5 + $0x8] sm:$0xff]
        %v362 = vld [vmem:[%s5 + $0x10] sm:$0xff]
        %v363 = vld [vmem:[%s5 + $0x18] sm:$0xff]
        %365 = vset.pattern.permute.xlu0 0
        %366 = vperm.xlu0 %365, %v360
        %v367 = vpop.permute.xlu0 %366
        %370 = vset.pattern.permute.xlu0 0
        %371 = vperm.xlu0 %370, %v361
        %v372 = vpop.permute.xlu0 %371
        %375 = vset.pattern.permute.xlu0 0
        %376 = vperm.xlu0 %375, %v362
        %v377 = vpop.permute.xlu0 %376
        %380 = vset.pattern.permute.xlu0 0
        %381 = vperm.xlu0 %380, %v363
        %v382 = vpop.permute.xlu0 %381
        %v384 = vlaneseq
        %v385 = vshrl.u32 %v384, 7
        %v386 = vsub.s32 0, %v385
        %v387 = vrot.slane %v359, %v386
        %v388 = vmul.f32 %v367, %v387
        %v389 = vmul.f32 %v372, %v387
        %v390 = vmul.f32 %v377, %v387
        %v391 = vmul.f32 %v382, %v387
        %392 = vxpose.xlu0.b32.start [1/16] %v347, 128
        %393 = vxpose.xlu0.b32.cont [2/16] %v348, 128
        %394 = vxpose.xlu0.b32.cont [3/16] 0.0, 128
        %395 = vxpose.xlu0.b32.cont [4/16] 0.0, 128
        %396 = vxpose.xlu0.b32.cont [5/16] 0.0, 128
        %397 = vxpose.xlu0.b32.cont [6/16] 0.0, 128
        %398 = vxpose.xlu0.b32.cont [7/16] 0.0, 128
        %399 = vxpose.xlu0.b32.cont [8/16] 0.0, 128
        %400 = vxpose.xlu0.b32.cont [9/16] 0.0, 128
        %401 = vxpose.xlu0.b32.cont [10/16] 0.0, 128
        %402 = vxpose.xlu0.b32.cont [11/16] 0.0, 128
        %403 = vxpose.xlu0.b32.cont [12/16] 0.0, 128
        %404 = vxpose.xlu0.b32.cont [13/16] 0.0, 128
        %405 = vxpose.xlu0.b32.cont [14/16] 0.0, 128
        %406 = vxpose.xlu0.b32.cont [15/16] 0.0, 128
        %407 = vxpose.xlu0.b32.end [16/16] 0.0, 128
        %v408 = vpop.trf.xlu0
        %v409 = vpop.trf.xlu0
        %v410 = vpop.trf.xlu0
        %v411 = vpop.trf.xlu0
        %v412 = vpop.trf.xlu0
        %v413 = vpop.trf.xlu0
        %v414 = vpop.trf.xlu0
        %v415 = vpop.trf.xlu0
        %v416 = vpop.trf.xlu0
        %v417 = vpop.trf.xlu0
        %v418 = vpop.trf.xlu0
        %v419 = vpop.trf.xlu0
        %v420 = vpop.trf.xlu0
        %v421 = vpop.trf.xlu0
        %v422 = vpop.trf.xlu0
        %v423 = vpop.trf.xlu0
        %vm424 = vcmask 130048
        %v426 = vsel %vm424, %v408, 0
        %v429 = vsel %vm424, %v409, 0
        %v432 = vsel %vm424, %v410, 0
        %v435 = vsel %vm424, %v411, 0
        %437 = vmatprep.subr.mxu0 0.0
        %438 = vmatpush1.msra.mxu0 0.0
        %439 = vmatprep.subr.mxu0 0.0
        %440 = vmatpush1.msra.mxu0 0.0
        %441 = vmatprep.subr.mxu0 0.0
        %442 = vmatpush1.msra.mxu0 0.0
        %443 = vmatprep.subr.mxu0 0.0
        %444 = vmatpush1.msra.mxu0 0.0
        %445 = vmatprep.subr.mxu0 0.0
        %446 = vmatpush1.msra.mxu0 0.0
        %447 = vmatprep.subr.mxu0 0.0
        %448 = vmatpush1.msra.mxu0 0.0
        %449 = vmatprep.subr.mxu0 0.0
        %450 = vmatpush1.msra.mxu0 0.0
        %451 = vmatprep.subr.mxu0 0.0
        %452 = vmatpush1.msra.mxu0 0.0
        %453 = vmatprep.subr.mxu0 0.0
        %454 = vmatpush1.msra.mxu0 0.0
        %455 = vmatprep.subr.mxu0 0.0
        %456 = vmatpush1.msra.mxu0 0.0
        %457 = vmatprep.subr.mxu0 0.0
        %458 = vmatpush1.msra.mxu0 0.0
        %459 = vmatprep.subr.mxu0 0.0
        %460 = vmatpush1.msra.mxu0 0.0
        %461 = vmatprep.subr.mxu0 0.0
        %462 = vmatpush1.msra.mxu0 0.0
        %463 = vmatprep.subr.mxu0 0.0
        %464 = vmatpush1.msra.mxu0 0.0
        %465 = vmatprep.subr.mxu0 0.0
        %466 = vmatpush1.msra.mxu0 %v346
        %467 = vmatprep.subr.mxu0 0.0
        %468 = vmatpush1.msra.mxu0 %v345
        %469 = vmatprep.subr.mxu0 0.0
        %470 = vmatpush2.msra.mxu0 0.0
        %471 = vmatprep.subr.mxu0 0.0
        %472 = vmatpush2.msra.mxu0 0.0
        %473 = vmatprep.subr.mxu0 0.0
        %474 = vmatpush2.msra.mxu0 0.0
        %475 = vmatprep.subr.mxu0 0.0
        %476 = vmatpush2.msra.mxu0 0.0
        %477 = vmatprep.subr.mxu0 0.0
        %478 = vmatpush2.msra.mxu0 0.0
        %479 = vmatprep.subr.mxu0 0.0
        %480 = vmatpush2.msra.mxu0 0.0
        %481 = vmatprep.subr.mxu0 0.0
        %482 = vmatpush2.msra.mxu0 0.0
        %483 = vmatprep.subr.mxu0 0.0
        %484 = vmatpush2.msra.mxu0 0.0
        %485 = vmatprep.subr.mxu0 0.0
        %486 = vmatpush2.msra.mxu0 0.0
        %487 = vmatprep.subr.mxu0 0.0
        %488 = vmatpush2.msra.mxu0 0.0
        %489 = vmatprep.subr.mxu0 0.0
        %490 = vmatpush2.msra.mxu0 0.0
        %491 = vmatprep.subr.mxu0 0.0
        %492 = vmatpush2.msra.mxu0 0.0
        %493 = vmatprep.subr.mxu0 0.0
        %494 = vmatpush2.msra.mxu0 0.0
        %495 = vmatprep.subr.mxu0 0.0
        %496 = vmatpush2.msra.mxu0 0.0
        %497 = vmatprep.subr.mxu0 0.0
        %498 = vmatpush2.msra.mxu0 0.0
        %499 = vmatprep.subr.mxu0 0.0
        %500 = vmatpush2.msra.mxu0 0.0
        %501 = vmatprep.mubr.f32.mxu0 0.0
        %502 = vmatmul.mubr.f32.gmra.mxu0 %v426
        %v503 = vpop.f32.mrf.mxu0
        %v504 = vadd.f32 %v388, %v503
        %v505 = vpop.f32.mrf.mxu0
        %506 = vmatprep.mubr.f32.mxu0 0.0
        %507 = vmatmul.mubr.f32.gmra.mxu0 %v429
        %v508 = vpop.f32.mrf.mxu0
        %v509 = vadd.f32 %v389, %v508
        %v510 = vpop.f32.mrf.mxu0
        %511 = vmatprep.mubr.f32.mxu0 0.0
        %512 = vmatmul.mubr.f32.gmra.mxu0 %v432
        %v513 = vpop.f32.mrf.mxu0
        %v514 = vadd.f32 %v390, %v513
        %v515 = vpop.f32.mrf.mxu0
        %516 = vmatprep.mubr.f32.mxu0 0.0
        %517 = vmatmul.mubr.f32.gmra.mxu0 %v435
        %v518 = vpop.f32.mrf.mxu0
        %v519 = vadd.f32 %v391, %v518
        %v520 = vpop.f32.mrf.mxu0
        %521 = vdwg.mxu0
        %522 = vset.pattern.permute.xlu0 1
        %523 = vperm.xlu0 %522, %v360
        %v524 = vpop.permute.xlu0 %523
        %526 = vset.pattern.permute.xlu0 1
        %527 = vperm.xlu0 %526, %v361
        %v528 = vpop.permute.xlu0 %527
        %530 = vset.pattern.permute.xlu0 1
        %531 = vperm.xlu0 %530, %v362
        %v532 = vpop.permute.xlu0 %531
        %534 = vset.pattern.permute.xlu0 1
        %535 = vperm.xlu0 %534, %v363
        %v536 = vpop.permute.xlu0 %535
        %v538 = vadd.f32 %v504, %v524
        %v539 = vadd.f32 %v509, %v528
        %v540 = vadd.f32 %v514, %v532
        %v541 = vadd.f32 %v519, %v536
        %v542 = vtanh.pop %v538
        %v543 = vtanh.pop %v539
        %v544 = vtanh.pop %v540
        %v545 = vtanh.pop %v541
        %546 = vxpose.xlu0.b32.start [1/16] %v542, 128
        %547 = vxpose.xlu0.b32.cont [2/16] %v543, 128
        %548 = vxpose.xlu0.b32.cont [3/16] %v544, 128
        %549 = vxpose.xlu0.b32.cont [4/16] %v545, 128
        %550 = vxpose.xlu0.b32.cont [5/16] 0.0, 128
        %551 = vxpose.xlu0.b32.cont [6/16] 0.0, 128
        %552 = vxpose.xlu0.b32.cont [7/16] 0.0, 128
        %553 = vxpose.xlu0.b32.cont [8/16] 0.0, 128
        %554 = vxpose.xlu0.b32.cont [9/16] 0.0, 128
        %555 = vxpose.xlu0.b32.cont [10/16] 0.0, 128
        %556 = vxpose.xlu0.b32.cont [11/16] 0.0, 128
        %557 = vxpose.xlu0.b32.cont [12/16] 0.0, 128
        %558 = vxpose.xlu0.b32.cont [13/16] 0.0, 128
        %559 = vxpose.xlu0.b32.cont [14/16] 0.0, 128
        %560 = vxpose.xlu0.b32.cont [15/16] 0.0, 128
        %561 = vxpose.xlu0.b32.end [16/16] 0.0, 128
        %v562 = vpop.trf.xlu0
        %v563 = vpop.trf.xlu0
        %v564 = vpop.trf.xlu0
        %v565 = vpop.trf.xlu0
        %v566 = vpop.trf.xlu0
        %v567 = vpop.trf.xlu0
        %v568 = vpop.trf.xlu0
        %v569 = vpop.trf.xlu0
        %v570 = vpop.trf.xlu0
        %v571 = vpop.trf.xlu0
        %v572 = vpop.trf.xlu0
        %v573 = vpop.trf.xlu0
        %v574 = vpop.trf.xlu0
        %v575 = vpop.trf.xlu0
        %v576 = vpop.trf.xlu0
        %v577 = vpop.trf.xlu0
        %582 = vrot.lane.b32.xlu0 %v542, 64
        %v583 = vpop.permute.xlu0 %582
        %584 = vrot.lane.b32.xlu0 %v543, 64
        %v585 = vpop.permute.xlu0 %584
        %586 = vrot.lane.b32.xlu0 %v544, 64
        %v587 = vpop.permute.xlu0 %586
        %588 = vrot.lane.b32.xlu0 %v545, 64
        %v589 = vpop.permute.xlu0 %588
        %vm594 = vcmask 261120
        %v596 = vsel %vm594, %v562, 0
        %v599 = vsel %vm594, %v563, 0
        %v602 = vsel %vm594, %v564, 0
        %v605 = vsel %vm594, %v565, 0
        %v608 = vsel %vm594, %v566, 0
        %v611 = vsel %vm594, %v567, 0
        %v614 = vsel %vm594, %v568, 0
        %v617 = vsel %vm594, %v569, 0
        %619 = vmatprep.subr.mxu0 0.0
        %620 = vmatpush1.msra.mxu0 0.0
        %621 = vmatprep.subr.mxu0 0.0
        %622 = vmatpush1.msra.mxu0 0.0
        %623 = vmatprep.subr.mxu0 0.0
        %624 = vmatpush1.msra.mxu0 0.0
        %625 = vmatprep.subr.mxu0 0.0
        %626 = vmatpush1.msra.mxu0 0.0
        %627 = vmatprep.subr.mxu0 0.0
        %628 = vmatpush1.msra.mxu0 0.0
        %629 = vmatprep.subr.mxu0 0.0
        %630 = vmatpush1.msra.mxu0 0.0
        %631 = vmatprep.subr.mxu0 0.0
        %632 = vmatpush1.msra.mxu0 0.0
        %633 = vmatprep.subr.mxu0 0.0
        %634 = vmatpush1.msra.mxu0 0.0
        %635 = vmatprep.subr.mxu0 0.0
        %636 = vmatpush1.msra.mxu0 0.0
        %637 = vmatprep.subr.mxu0 0.0
        %638 = vmatpush1.msra.mxu0 0.0
        %639 = vmatprep.subr.mxu0 0.0
        %640 = vmatpush1.msra.mxu0 0.0
        %641 = vmatprep.subr.mxu0 0.0
        %642 = vmatpush1.msra.mxu0 0.0
        %643 = vmatprep.subr.mxu0 0.0
        %644 = vmatpush1.msra.mxu0 %v589
        %645 = vmatprep.subr.mxu0 0.0
        %646 = vmatpush1.msra.mxu0 %v587
        %647 = vmatprep.subr.mxu0 0.0
        %648 = vmatpush1.msra.mxu0 %v585
        %649 = vmatprep.subr.mxu0 0.0
        %650 = vmatpush1.msra.mxu0 %v583
        %651 = vmatprep.subr.mxu0 0.0
        %652 = vmatpush2.msra.mxu0 0.0
        %653 = vmatprep.subr.mxu0 0.0
        %654 = vmatpush2.msra.mxu0 0.0
        %655 = vmatprep.subr.mxu0 0.0
        %656 = vmatpush2.msra.mxu0 0.0
        %657 = vmatprep.subr.mxu0 0.0
        %658 = vmatpush2.msra.mxu0 0.0
        %659 = vmatprep.subr.mxu0 0.0
        %660 = vmatpush2.msra.mxu0 0.0
        %661 = vmatprep.subr.mxu0 0.0
        %662 = vmatpush2.msra.mxu0 0.0
        %663 = vmatprep.subr.mxu0 0.0
        %664 = vmatpush2.msra.mxu0 0.0
        %665 = vmatprep.subr.mxu0 0.0
        %666 = vmatpush2.msra.mxu0 0.0
        %667 = vmatprep.subr.mxu0 0.0
        %668 = vmatpush2.msra.mxu0 0.0
        %669 = vmatprep.subr.mxu0 0.0
        %670 = vmatpush2.msra.mxu0 0.0
        %671 = vmatprep.subr.mxu0 0.0
        %672 = vmatpush2.msra.mxu0 0.0
        %673 = vmatprep.subr.mxu0 0.0
        %674 = vmatpush2.msra.mxu0 0.0
        %675 = vmatprep.subr.mxu0 0.0
        %676 = vmatpush2.msra.mxu0 0.0
        %677 = vmatprep.subr.mxu0 0.0
        %678 = vmatpush2.msra.mxu0 0.0
        %679 = vmatprep.subr.mxu0 0.0
        %680 = vmatpush2.msra.mxu0 0.0
        %681 = vmatprep.subr.mxu0 0.0
        %682 = vmatpush2.msra.mxu0 0.0
        %683 = vmatprep.mubr.f32.mxu0 0.0
        %684 = vmatmul.mubr.f32.gmra.mxu0 %v596
        %v685 = vpop.f32.mrf.mxu0
        %v686 = vadd.f32 0.0, %v685
        %v687 = vpop.f32.mrf.mxu0
        %688 = vmatprep.mubr.f32.mxu0 0.0
        %689 = vmatmul.mubr.f32.gmra.mxu0 %v599
        %v690 = vpop.f32.mrf.mxu0
        %v691 = vadd.f32 0.0, %v690
        %v692 = vpop.f32.mrf.mxu0
        %693 = vmatprep.mubr.f32.mxu0 0.0
        %694 = vmatmul.mubr.f32.gmra.mxu0 %v602
        %v695 = vpop.f32.mrf.mxu0
        %v696 = vadd.f32 0.0, %v695
        %v697 = vpop.f32.mrf.mxu0
        %698 = vmatprep.mubr.f32.mxu0 0.0
        %699 = vmatmul.mubr.f32.gmra.mxu0 %v605
        %v700 = vpop.f32.mrf.mxu0
        %v701 = vadd.f32 0.0, %v700
        %v702 = vpop.f32.mrf.mxu0
        %703 = vmatprep.mubr.f32.mxu0 0.0
        %704 = vmatmul.mubr.f32.gmra.mxu0 %v608
        %v705 = vpop.f32.mrf.mxu0
        %v706 = vadd.f32 0.0, %v705
        %v707 = vpop.f32.mrf.mxu0
        %708 = vmatprep.mubr.f32.mxu0 0.0
        %709 = vmatmul.mubr.f32.gmra.mxu0 %v611
        %v710 = vpop.f32.mrf.mxu0
        %v711 = vadd.f32 0.0, %v710
        %v712 = vpop.f32.mrf.mxu0
        %713 = vmatprep.mubr.f32.mxu0 0.0
        %714 = vmatmul.mubr.f32.gmra.mxu0 %v614
        %v715 = vpop.f32.mrf.mxu0
        %v716 = vadd.f32 0.0, %v715
        %v717 = vpop.f32.mrf.mxu0
        %718 = vmatprep.mubr.f32.mxu0 0.0
        %719 = vmatmul.mubr.f32.gmra.mxu0 %v617
        %v720 = vpop.f32.mrf.mxu0
        %v721 = vadd.f32 0.0, %v720
        %v722 = vpop.f32.mrf.mxu0
        %723 = vdwg.mxu0
        %726 = vrot.lane.b32.xlu0 %v696, 112
        %v727 = vpop.permute.xlu0 %726
        %728 = vrot.lane.b32.xlu0 %v701, 112
        %v729 = vpop.permute.xlu0 %728
        %732 = vrot.lane.b32.xlu0 %v706, 96
        %v733 = vpop.permute.xlu0 %732
        %734 = vrot.lane.b32.xlu0 %v711, 96
        %v735 = vpop.permute.xlu0 %734
        %738 = vrot.lane.b32.xlu0 %v716, 80
        %v739 = vpop.permute.xlu0 %738
        %740 = vrot.lane.b32.xlu0 %v721, 80
        %v741 = vpop.permute.xlu0 %740
        %744 = vrot.lane.b32.xlu0 %v686, 16
        %v745 = vpop.permute.xlu0 %744
        %746 = vrot.lane.b32.xlu0 %v691, 16
        %v747 = vpop.permute.xlu0 %746
        %748 = vrot.lane.b32.xlu0 %v727, 16
        %v749 = vpop.permute.xlu0 %748
        %750 = vrot.lane.b32.xlu0 %v729, 16
        %v751 = vpop.permute.xlu0 %750
        %752 = vrot.lane.b32.xlu0 %v733, 16
        %v753 = vpop.permute.xlu0 %752
        %754 = vrot.lane.b32.xlu0 %v735, 16
        %v755 = vpop.permute.xlu0 %754
        %756 = vrot.lane.b32.xlu0 %v739, 16
        %v757 = vpop.permute.xlu0 %756
        %758 = vrot.lane.b32.xlu0 %v741, 16
        %v759 = vpop.permute.xlu0 %758
        %v768 = vsel %vm424, 0.0, %v745
        %v769 = vsel %vm424, 0.0, %v747
        %v770 = vsel %vm424, 0.0, %v749
        %v771 = vsel %vm424, 0.0, %v751
        %v772 = vsel %vm424, 0.0, %v753
        %v773 = vsel %vm424, 0.0, %v755
        %v774 = vsel %vm424, 0.0, %v757
        %v775 = vsel %vm424, 0.0, %v759
        %v776 = vlaneseq
        %v777 = vshrl.u32 %v776, 7
        %v778 = vadd.s32 %v777, 8
        %v779 = vadd.s32 %v777, 16
        %v780 = vadd.s32 %v777, 24
        %v781 = vadd.s32 %v777, 32
        %v782 = vadd.s32 %v777, 40
        %v783 = vadd.s32 %v777, 48
        %v784 = vadd.s32 %v777, 56
        %v785 = vand.u32 %v777, 15
        %v786 = vand.u32 %v778, 15
        %v787 = vand.u32 %v779, 15
        %v788 = vand.u32 %v780, 15
        %v789 = vand.u32 %v781, 15
        %v790 = vand.u32 %v782, 15
        %v791 = vand.u32 %v783, 15
        %v792 = vand.u32 %v784, 15
        %801 = vrot.lane.b32.xlu0 %v768, 127
        %v802 = vpop.permute.xlu0 %801
        %803 = vrot.lane.b32.xlu0 %v769, 127
        %v804 = vpop.permute.xlu0 %803
        %805 = vrot.lane.b32.xlu0 %v770, 127
        %v806 = vpop.permute.xlu0 %805
        %807 = vrot.lane.b32.xlu0 %v771, 127
        %v808 = vpop.permute.xlu0 %807
        %809 = vrot.lane.b32.xlu0 %v772, 127
        %v810 = vpop.permute.xlu0 %809
        %811 = vrot.lane.b32.xlu0 %v773, 127
        %v812 = vpop.permute.xlu0 %811
        %813 = vrot.lane.b32.xlu0 %v774, 127
        %v814 = vpop.permute.xlu0 %813
        %815 = vrot.lane.b32.xlu0 %v775, 127
        %v816 = vpop.permute.xlu0 %815
        %vm825 = vcmask 252928
        %v826 = vsel %vm825, %v802, 0.0
        %v827 = vsel %vm825, %v804, 0.0
        %v828 = vsel %vm825, %v806, 0.0
        %v829 = vsel %vm825, %v808, 0.0
        %v830 = vsel %vm825, %v810, 0.0
        %v831 = vsel %vm825, %v812, 0.0
        %v832 = vsel %vm825, %v814, 0.0
        %v833 = vsel %vm825, %v816, 0.0
        %v834 = vand.u32 %v785, 1
        %v835 = vand.u32 %v786, 1
        %v836 = vand.u32 %v787, 1
        %v837 = vand.u32 %v788, 1
        %v838 = vand.u32 %v789, 1
        %v839 = vand.u32 %v790, 1
        %v840 = vand.u32 %v791, 1
        %v841 = vand.u32 %v792, 1
        %vm842 = vcmp.ne.s32.totalorder %v834, 0
        %vm843 = vcmp.ne.s32.totalorder %v835, 0
        %vm844 = vcmp.ne.s32.totalorder %v836, 0
        %vm845 = vcmp.ne.s32.totalorder %v837, 0
        %vm846 = vcmp.ne.s32.totalorder %v838, 0
        %vm847 = vcmp.ne.s32.totalorder %v839, 0
        %vm848 = vcmp.ne.s32.totalorder %v840, 0
        %vm849 = vcmp.ne.s32.totalorder %v841, 0
        %v850 = vsel %vm842, %v826, %v768
        %v851 = vsel %vm843, %v827, %v769
        %v852 = vsel %vm844, %v828, %v770
        %v853 = vsel %vm845, %v829, %v771
        %v854 = vsel %vm846, %v830, %v772
        %v855 = vsel %vm847, %v831, %v773
        %v856 = vsel %vm848, %v832, %v774
        %v857 = vsel %vm849, %v833, %v775
        %866 = vrot.lane.b32.xlu0 %v850, 126
        %v867 = vpop.permute.xlu0 %866
        %868 = vrot.lane.b32.xlu0 %v851, 126
        %v869 = vpop.permute.xlu0 %868
        %870 = vrot.lane.b32.xlu0 %v852, 126
        %v871 = vpop.permute.xlu0 %870
        %872 = vrot.lane.b32.xlu0 %v853, 126
        %v873 = vpop.permute.xlu0 %872
        %874 = vrot.lane.b32.xlu0 %v854, 126
        %v875 = vpop.permute.xlu0 %874
        %876 = vrot.lane.b32.xlu0 %v855, 126
        %v877 = vpop.permute.xlu0 %876
        %878 = vrot.lane.b32.xlu0 %v856, 126
        %v879 = vpop.permute.xlu0 %878
        %880 = vrot.lane.b32.xlu0 %v857, 126
        %v881 = vpop.permute.xlu0 %880
        %vm890 = vcmask 244736
        %v891 = vsel %vm890, %v867, 0.0
        %v892 = vsel %vm890, %v869, 0.0
        %v893 = vsel %vm890, %v871, 0.0
        %v894 = vsel %vm890, %v873, 0.0
        %v895 = vsel %vm890, %v875, 0.0
        %v896 = vsel %vm890, %v877, 0.0
        %v897 = vsel %vm890, %v879, 0.0
        %v898 = vsel %vm890, %v881, 0.0
        %v899 = vand.u32 %v785, 2
        %v900 = vand.u32 %v786, 2
        %v901 = vand.u32 %v787, 2
        %v902 = vand.u32 %v788, 2
        %v903 = vand.u32 %v789, 2
        %v904 = vand.u32 %v790, 2
        %v905 = vand.u32 %v791, 2
        %v906 = vand.u32 %v792, 2
        %vm907 = vcmp.ne.s32.totalorder %v899, 0
        %vm908 = vcmp.ne.s32.totalorder %v900, 0
        %vm909 = vcmp.ne.s32.totalorder %v901, 0
        %vm910 = vcmp.ne.s32.totalorder %v902, 0
        %vm911 = vcmp.ne.s32.totalorder %v903, 0
        %vm912 = vcmp.ne.s32.totalorder %v904, 0
        %vm913 = vcmp.ne.s32.totalorder %v905, 0
        %vm914 = vcmp.ne.s32.totalorder %v906, 0
        %v915 = vsel %vm907, %v891, %v850
        %v916 = vsel %vm908, %v892, %v851
        %v917 = vsel %vm909, %v893, %v852
        %v918 = vsel %vm910, %v894, %v853
        %v919 = vsel %vm911, %v895, %v854
        %v920 = vsel %vm912, %v896, %v855
        %v921 = vsel %vm913, %v897, %v856
        %v922 = vsel %vm914, %v898, %v857
        %931 = vrot.lane.b32.xlu0 %v915, 124
        %v932 = vpop.permute.xlu0 %931
        %933 = vrot.lane.b32.xlu0 %v916, 124
        %v934 = vpop.permute.xlu0 %933
        %935 = vrot.lane.b32.xlu0 %v917, 124
        %v936 = vpop.permute.xlu0 %935
        %937 = vrot.lane.b32.xlu0 %v918, 124
        %v938 = vpop.permute.xlu0 %937
        %939 = vrot.lane.b32.xlu0 %v919, 124
        %v940 = vpop.permute.xlu0 %939
        %941 = vrot.lane.b32.xlu0 %v920, 124
        %v942 = vpop.permute.xlu0 %941
        %943 = vrot.lane.b32.xlu0 %v921, 124
        %v944 = vpop.permute.xlu0 %943
        %945 = vrot.lane.b32.xlu0 %v922, 124
        %v946 = vpop.permute.xlu0 %945
        %vm955 = vcmask 228352
        %v956 = vsel %vm955, %v932, 0.0
        %v957 = vsel %vm955, %v934, 0.0
        %v958 = vsel %vm955, %v936, 0.0
        %v959 = vsel %vm955, %v938, 0.0
        %v960 = vsel %vm955, %v940, 0.0
        %v961 = vsel %vm955, %v942, 0.0
        %v962 = vsel %vm955, %v944, 0.0
        %v963 = vsel %vm955, %v946, 0.0
        %v964 = vand.u32 %v785, 4
        %v965 = vand.u32 %v786, 4
        %v966 = vand.u32 %v787, 4
        %v967 = vand.u32 %v788, 4
        %v968 = vand.u32 %v789, 4
        %v969 = vand.u32 %v790, 4
        %v970 = vand.u32 %v791, 4
        %v971 = vand.u32 %v792, 4
        %vm972 = vcmp.ne.s32.totalorder %v964, 0
        %vm973 = vcmp.ne.s32.totalorder %v965, 0
        %vm974 = vcmp.ne.s32.totalorder %v966, 0
        %vm975 = vcmp.ne.s32.totalorder %v967, 0
        %vm976 = vcmp.ne.s32.totalorder %v968, 0
        %vm977 = vcmp.ne.s32.totalorder %v969, 0
        %vm978 = vcmp.ne.s32.totalorder %v970, 0
        %vm979 = vcmp.ne.s32.totalorder %v971, 0
        %v980 = vsel %vm972, %v956, %v915
        %v981 = vsel %vm973, %v957, %v916
        %v982 = vsel %vm974, %v958, %v917
        %v983 = vsel %vm975, %v959, %v918
        %v984 = vsel %vm976, %v960, %v919
        %v985 = vsel %vm977, %v961, %v920
        %v986 = vsel %vm978, %v962, %v921
        %v987 = vsel %vm979, %v963, %v922
        %996 = vrot.lane.b32.xlu0 %v980, 120
        %v997 = vpop.permute.xlu0 %996
        %998 = vrot.lane.b32.xlu0 %v981, 120
        %v999 = vpop.permute.xlu0 %998
        %1000 = vrot.lane.b32.xlu0 %v982, 120
        %v1001 = vpop.permute.xlu0 %1000
        %1002 = vrot.lane.b32.xlu0 %v983, 120
        %v1003 = vpop.permute.xlu0 %1002
        %1004 = vrot.lane.b32.xlu0 %v984, 120
        %v1005 = vpop.permute.xlu0 %1004
        %1006 = vrot.lane.b32.xlu0 %v985, 120
        %v1007 = vpop.permute.xlu0 %1006
        %1008 = vrot.lane.b32.xlu0 %v986, 120
        %v1009 = vpop.permute.xlu0 %1008
        %1010 = vrot.lane.b32.xlu0 %v987, 120
        %v1011 = vpop.permute.xlu0 %1010
        %vm1020 = vcmask 195584
        %v1021 = vsel %vm1020, %v997, 0.0
        %v1022 = vsel %vm1020, %v999, 0.0
        %v1023 = vsel %vm1020, %v1001, 0.0
        %v1024 = vsel %vm1020, %v1003, 0.0
        %v1025 = vsel %vm1020, %v1005, 0.0
        %v1026 = vsel %vm1020, %v1007, 0.0
        %v1027 = vsel %vm1020, %v1009, 0.0
        %v1028 = vsel %vm1020, %v1011, 0.0
        %v1029 = vand.u32 %v785, 8
        %v1030 = vand.u32 %v786, 8
        %v1031 = vand.u32 %v787, 8
        %v1032 = vand.u32 %v788, 8
        %v1033 = vand.u32 %v789, 8
        %v1034 = vand.u32 %v790, 8
        %v1035 = vand.u32 %v791, 8
        %v1036 = vand.u32 %v792, 8
        %vm1037 = vcmp.ne.s32.totalorder %v1029, 0
        %vm1038 = vcmp.ne.s32.totalorder %v1030, 0
        %vm1039 = vcmp.ne.s32.totalorder %v1031, 0
        %vm1040 = vcmp.ne.s32.totalorder %v1032, 0
        %vm1041 = vcmp.ne.s32.totalorder %v1033, 0
        %vm1042 = vcmp.ne.s32.totalorder %v1034, 0
        %vm1043 = vcmp.ne.s32.totalorder %v1035, 0
        %vm1044 = vcmp.ne.s32.totalorder %v1036, 0
        %v1045 = vsel %vm1037, %v1021, %v980
        %v1046 = vsel %vm1038, %v1022, %v981
        %v1047 = vsel %vm1039, %v1023, %v982
        %v1048 = vsel %vm1040, %v1024, %v983
        %v1049 = vsel %vm1041, %v1025, %v984
        %v1050 = vsel %vm1042, %v1026, %v985
        %v1051 = vsel %vm1043, %v1027, %v986
        %v1052 = vsel %vm1044, %v1028, %v987
        %v1053 = vsel %vm594, %v1045, 0.0
        %v1054 = vsel %vm594, %v1046, 0.0
        %v1055 = vadd.f32 %v1053, %v1054
        %v1056 = vrot.slane %v1055, 4
        %v1057 = vadd.f32 %v1055, %v1056
        %v1058 = vrot.slane %v1057, 2
        %v1059 = vadd.f32 %v1057, %v1058
        %v1060 = vrot.slane %v1059, 1
        %v1061 = vadd.f32 %v1059, %v1060
        %v1062 = vsel %vm594, %v1047, 0.0
        %v1063 = vsel %vm594, %v1048, 0.0
        %v1064 = vadd.f32 %v1062, %v1063
        %v1065 = vrot.slane %v1064, 4
        %v1066 = vadd.f32 %v1064, %v1065
        %v1067 = vrot.slane %v1066, 2
        %v1068 = vadd.f32 %v1066, %v1067
        %v1069 = vrot.slane %v1068, 1
        %v1070 = vadd.f32 %v1068, %v1069
        %v1071 = vsel %vm594, %v1049, 0.0
        %v1072 = vsel %vm594, %v1050, 0.0
        %v1073 = vadd.f32 %v1071, %v1072
        %v1074 = vrot.slane %v1073, 4
        %v1075 = vadd.f32 %v1073, %v1074
        %v1076 = vrot.slane %v1075, 2
        %v1077 = vadd.f32 %v1075, %v1076
        %v1078 = vrot.slane %v1077, 1
        %v1079 = vadd.f32 %v1077, %v1078
        %v1080 = vsel %vm594, %v1051, 0.0
        %v1081 = vsel %vm594, %v1052, 0.0
        %v1082 = vadd.f32 %v1080, %v1081
        %v1083 = vrot.slane %v1082, 4
        %v1084 = vadd.f32 %v1082, %v1083
        %v1085 = vrot.slane %v1084, 2
        %v1086 = vadd.f32 %v1084, %v1085
        %v1087 = vrot.slane %v1086, 1
        %v1088 = vadd.f32 %v1086, %v1087
        %1090 = vrot.lane.b32.xlu0 %v1070, 32
        %v1091 = vpop.permute.xlu0 %1090
        %1094 = vrot.lane.b32.xlu0 %v1079, 64
        %v1095 = vpop.permute.xlu0 %1094
        %1098 = vrot.lane.b32.xlu0 %v1088, 96
        %v1099 = vpop.permute.xlu0 %1098
        %v1101 = vsel %vm594, %v1061, %v1091
        %v1102 = vsel %vm344, %v1101, %v1095
        %vm1103 = vcmask 785408
        %v1104 = vsel %vm1103, %v1102, %v1099
        %1105 = vst [vmem:[%s320] sm:$0x1] %v1104
        %s1106 = sand.u32 %s178, 1
        %s1107 = scalar_lea.sflag [#allocation4], %s1106
        %s1108 = sand.u32 %s178, 1
        %s1109 = scalar_lea.vmem [#allocation7], %s1108
        // Predicated region
        $region53: #{tpu_custom_call.1} parent=43 // pred_check
          %p1110 = pneg %p188
        $region54: #{tpu_custom_call.1} parent=43 // pred_check_branch
          %1112 = sbr.rel (%p1110) target = $region56
        $region55: #{tpu_custom_call.1} parent=43 // pred_region
          %s1114 = ssub.s32 16, 16
          %1115 = vsyncadd %s1107, %s1114
          %s1116 = smul.addr %s24, 16
          %s1117 = scalar_lea.hbm %s6, %s1116
          %s1119 = sshll.u32 %s1109, 4
          %s1120 = int_to_ptr.vmem [resolvable:$true] %s1119
          %1122 = dma.vmem_to_hbm [thread:$0]  %s1120, 16, %s1117, %s1107
        $region56: #{tpu_custom_call.1} parent=43 // pred_fallthru
          _
      $region44: #{tpu_custom_call.1} parent=5 // pred_fallthru
        _
      %p1123 = scmp.le.s32.totalorder 2, %s19
      // Predicated region
      $region57: #{tpu_custom_call.1} parent=5 // pred_check
        %p1124 = pneg %p1123
      $region58: #{tpu_custom_call.1} parent=5 // pred_check_branch
        %1126 = sbr.rel (%p1124) target = $region60
      $region59: #{tpu_custom_call.1} parent=5 // pred_region
        %s1127 = ssub.s32 %s19, 2
        // Predicated region
        $region61: #{tpu_custom_call.1} parent=59 // pred_check
          %p1128 = pneg %p194
        $region62: #{tpu_custom_call.1} parent=59 // pred_check_branch
          %1130 = sbr.rel (%p1128) target = $region64
        $region63: #{tpu_custom_call.1} parent=59 // pred_region
          %s1131 = sand.u32 %s179, 1
          %s1132 = scalar_lea.sflag [#allocation4], %s1131
          %s1133 = sand.u32 %s179, 1
          %s1134 = scalar_lea.vmem [#allocation7], %s1133
          %1135 = dma.done %s1132, 16
        $region64: #{tpu_custom_call.1} parent=59 // pred_fallthru
          _
      $region60: #{tpu_custom_call.1} parent=5 // pred_fallthru
        _
    $region6: #{tpu_custom_call.1} parent=1 // loop_footer
      %s23 = sadd.s32 1, %s19
    $region7: #{tpu_custom_call.1} parent=1 // loop_footer_branch
      %18 = sbr.rel target = $region3
    $region8: #{tpu_custom_call.1} parent=1 // loop_exit
      _
    %1136 = vsyncpa [#allocation3], 1
    %s1137 = scalar_lea.sflag [#allocation3], 1
    %1138 = vsyncpa %s1137, 1
    %1139 = vsyncpa [#allocation6], 1
    %1140 = vsyncpa [#allocation4], 1
    %s1141 = scalar_lea.sflag [#allocation4], 1
    %1142 = vsyncpa %s1141, 1

</llo_original>
